<compile_context>
chip_gen: v7x
topology: tpu7x:2x2x1
jax: 0.10.0
libtpu: 0.0.40
codegen_flags: <defaults>
</compile_context>

<pallas_src>
import math

import jax
import jax.numpy as jnp
from jax.experimental import pallas as pl
from jax.experimental.pallas import tpu as pltpu


def _round_up(x, m):
    return ((x + m - 1) // m) * m


def _recommendation_kernel(item_ref, seq_ref, wq_ref, bq_ref, w_ref, b_ref, out_ref):
    """One batch-tile of the forward pass.

    item_ref: (TB, D)        item embeddings (native dtype)
    seq_ref:  (TB, S, D)     sequence embeddings (native dtype)
    wq_ref:   (D, D)         attention query projection weight, pre-transposed
    bq_ref:   (1, D)         attention query projection bias
    w_ref:    (D, 2)         classifier weight, pre-transposed
    b_ref:    (1, 2)         classifier bias
    out_ref:  (TB, 2)        log-softmax output (f32)
    """
    item = item_ref[...]                                   # (TB, D), native dtype
    seq = seq_ref[...].astype(jnp.float32)                 # single upcast, reused twice

    # --- attention1: q = item @ Wq^T + bq  (one proper MXU matmul per tile) ---
    q = jnp.dot(item, wq_ref[...], preferred_element_type=jnp.float32) + bq_ref[...]

    # scores[b, s] = sum_d q[b, d] * seq[b, s, d]
    # VPU multiply + XLU lane-reduce: avoids TB serialized M=1 matmuls through the MXU
    # result FIFO (v5e/v6e); kernel is HBM-bound so these slots are otherwise idle.
    scores = jnp.sum(q[:, None, :] * seq, axis=-1)         # (TB, S) f32, sublane-dense

    # softmax over the sequence axis on the dense (TB, S) slab
    m = jnp.max(scores, axis=-1, keepdims=True)
    e = jnp.exp(scores - m)
    weights = e * pl.reciprocal(jnp.sum(e, axis=-1, keepdims=True), approx=False)

    # x[b, d] = sum_s weights[b, s] * seq[b, s, d]   (VPU multiply + sublane reduce)
    x = jnp.sum(weights[:, :, None] * seq, axis=1)         # (TB, D) f32

    # --- F.linear(x, weight, bias) ---  (weight pre-transposed -> plain dot)
    logits = jnp.dot(x, w_ref[...], preferred_element_type=jnp.float32) + b_ref[...]

    # --- log_softmax over classes (PyTorch implicit dim=1 for a 2-D tensor) ---
    lm = jnp.max(logits, axis=-1, keepdims=True)
    z = logits - lm
    lse = jnp.log(jnp.sum(jnp.exp(z), axis=-1, keepdims=True))
    out_ref[...] = (z - lse).astype(out_ref.dtype)


def _pick_tile(B, S, D, in_itemsize):
    """VMEM-budget-driven batch tile and an explicit vmem_limit_bytes for Mosaic."""
    try:
        vmem_cap = int(getattr(pltpu.get_tpu_info(), "vmem_capacity_bytes"))
    except Exception:
        vmem_cap = 64 * 1024 * 1024          # conservative fallback (v7x per-TC VMEM)
    budget = int(vmem_cap * 0.70)            # headroom for compiler scratch

    d_l = _round_up(D, 128)                  # lane-padded feature dim
    s_l = _round_up(S, 128)

    def est(tb):
        item_blk = 2 * tb * d_l * in_itemsize                       # double-buffered
        seq_blk = 2 * tb * S * d_l * in_itemsize                    # double-buffered
        w_res = 2 * (D * d_l + 8 * 128 + _round_up(D, 8) * 128 + 8 * 128) * 4
        out_blk = 2 * tb * 128 * 4
        temps = tb * S * d_l * 4 + tb * s_l * 4 + 3 * tb * d_l * 4  # in-kernel f32 temps
        return item_blk + seq_blk + w_res + out_blk + temps

    b8 = _round_up(B, 8)
    # Keep at least 2 grid steps whenever possible so the "parallel" batch axis can be
    # sharded across v7x's two TensorCores; cap the tile to bound padding waste.
    cap = b8 if b8 < 16 else max(8, _round_up(b8 // 2, 8))
    cap = min(cap, 4096)

    tb = 8
    while tb * 2 <= cap and est(tb * 2) <= budget:
        tb *= 2

    vmem_limit = min(int(vmem_cap * 0.9), max(2 * est(tb), 32 * 1024 * 1024))
    return tb, vmem_limit


def recommendation_forward(item_emb, sequence_emb, params):
    """item_emb: (B, 1, D), sequence_emb: (B, S, D) -> (B, 2) log-probs."""
    B, one, D = item_emb.shape
    assert one == 1
    S = sequence_emb.shape[1]

    # Native dtypes in; f32 accumulation / softmax math happens inside the kernel.
    item2d = item_emb.reshape(B, D)
    seq = sequence_emb

    # Pre-transpose weights outside the kernel (folded into the params by XLA).
    wq_t = params["attn_wq"].T                # (D, D)
    bq = params["attn_bq"].reshape(1, D)      # (1, D)
    w_t = params["weight"].T                  # (D, 2)
    b = params["bias"].reshape(1, 2)          # (1, 2)

    in_itemsize = jnp.dtype(seq.dtype).itemsize
    tb, vmem_limit = _pick_tile(B, S, D, in_itemsize)

    # Pad the batch up to a multiple of the tile (never one giant whole-batch block);
    # zero rows are numerically benign (uniform softmax) and sliced off below.
    B_pad = _round_up(B, tb)
    if B_pad != B:
        pad = B_pad - B
        item2d = jnp.pad(item2d, ((0, pad), (0, 0)))
        seq = jnp.pad(seq, ((0, pad), (0, 0), (0, 0)))
    grid = (B_pad // tb,)

    bytes_per = lambda a: a.size * a.dtype.itemsize
    cost = pl.CostEstimate(
        flops=2 * B_pad * D * D + 2 * B_pad * S * D + 2 * B_pad * S * D + 2 * B_pad * D * 2,
        transcendentals=B_pad * S + 3 * B_pad,
        bytes_accessed=(bytes_per(item2d) + bytes_per(seq) + bytes_per(wq_t)
                        + bytes_per(bq) + bytes_per(w_t) + bytes_per(b) + B_pad * 2 * 4),
    )

    out = pl.pallas_call(
        _recommendation_kernel,
        out_shape=jax.ShapeDtypeStruct((B_pad, 2), jnp.float32),
        grid_spec=pltpu.PrefetchScalarGridSpec(
            num_scalar_prefetch=0,
            grid=grid,
            in_specs=[
                pl.BlockSpec((tb, D), lambda i: (i, 0)),        # item
                pl.BlockSpec((tb, S, D), lambda i: (i, 0, 0)),  # seq
                pl.BlockSpec((D, D), lambda i: (0, 0)),         # Wq^T (resident)
                pl.BlockSpec((1, D), lambda i: (0, 0)),         # bq   (resident)
                pl.BlockSpec((D, 2), lambda i: (0, 0)),         # W^T  (resident)
                pl.BlockSpec((1, 2), lambda i: (0, 0)),         # b    (resident)
            ],
            out_specs=pl.BlockSpec((tb, 2), lambda i: (i, 0)),
        ),
        compiler_params=pltpu.CompilerParams(
            dimension_semantics=("parallel",),
            vmem_limit_bytes=vmem_limit,
        ),
        cost_estimate=cost,
    )(item2d, seq, wq_t, bq, w_t, b)

    return out[:B] if B_pad != B else out


def init_params(key, in_features):
    """Deterministic init matching the PyTorch module's init scheme."""
    k1, k2, k3, k4 = jax.random.split(key, 4)
    stdv = 1.0 / math.sqrt(in_features)
    weight = jax.random.uniform(k1, (2, in_features), jnp.float32, -stdv, stdv)
    bias = jax.random.uniform(k2, (2,), jnp.float32, -stdv, stdv)
    # attention1 query projection (nn.Linear(D, D)-style init)
    attn_wq = jax.random.uniform(k3, (in_features, in_features), jnp.float32, -stdv, stdv)
    attn_bq = jax.random.uniform(k4, (in_features,), jnp.float32, -stdv, stdv)
    return {"weight": weight, "bias": bias, "attn_wq": attn_wq, "attn_bq": attn_bq}


def _reference_forward(item_emb, sequence_emb, params):
    """Pure-JAX reference for correctness checking."""
    B, _, D = item_emb.shape
    item = item_emb.reshape(B, D).astype(jnp.float32)
    seq = sequence_emb.astype(jnp.float32)
    q = item @ params["attn_wq"].T + params["attn_bq"]
    scores = jnp.einsum("bd,bsd->bs", q, seq)
    weights = jax.nn.softmax(scores, axis=-1)
    x = jnp.einsum("bs,bsd->bd", weights, seq)
    logits = x @ params["weight"].T + params["bias"]
    return jax.nn.log_softmax(logits, axis=-1)


if __name__ == "__main__":
    B, S, D = 2, 8, 32
    key = jax.random.PRNGKey(0)
    k_item, k_seq, k_params = jax.random.split(key, 3)

    item_emb = jax.random.normal(k_item, (B, 1, D), jnp.float32)
    sequence_emb = jax.random.normal(k_seq, (B, S, D), jnp.float32)
    params = init_params(k_params, D)

    out = recommendation_forward(item_emb, sequence_emb, params)
    out = jax.block_until_ready(out)
    ref = _reference_forward(item_emb, sequence_emb, params)
    assert out.shape == (B, 2)
    assert jnp.allclose(out, ref, atol=1e-5, rtol=1e-5)

    # Second check: non-multiple-of-8 batch with grid > 1 (exercises padding + the
    # multi-step pipelined path).
    B2 = 18
    item2 = jax.random.normal(jax.random.PRNGKey(1), (B2, 1, D), jnp.float32)
    seq2 = jax.random.normal(jax.random.PRNGKey(2), (B2, S, D), jnp.float32)
    out2 = jax.block_until_ready(recommendation_forward(item2, seq2, params))
    ref2 = _reference_forward(item2, seq2, params)
    assert out2.shape == (B2, 2)
    assert jnp.allclose(out2, ref2, atol=1e-5, rtol=1e-5)

    print("KERNEL_OK")
</pallas_src>

<mosaic_0001>
module attributes {stable_mosaic.version = 11 : i64} {
  func.func @_recommendation_kernel(%arg0: i32, %arg1: memref<8x32xf32, #tpu.memory_space<vmem>>, %arg2: memref<8x8x32xf32, #tpu.memory_space<vmem>>, %arg3: memref<32x32xf32, #tpu.memory_space<vmem>>, %arg4: memref<1x32xf32, #tpu.memory_space<vmem>>, %arg5: memref<32x2xf32, #tpu.memory_space<vmem>>, %arg6: memref<1x2xf32, #tpu.memory_space<vmem>>, %arg7: memref<8x2xf32, #tpu.memory_space<vmem>>) attributes {dimension_semantics = [#tpu.dimension_semantics<parallel>], iteration_bounds = array<i64: 1>, scalar_prefetch = 0 : i64, scratch_operands = 0 : i64, tpu.core_type = #tpu.core_type<tc>, window_params = [{transform_indices = @transform_0, window_bounds = array<i64: 8, 32>}, {transform_indices = @transform_1, window_bounds = array<i64: 8, 8, 32>}, {pipeline_mode = #tpu.pipeline_mode<synchronous>, transform_indices = @transform_2, window_bounds = array<i64: 32, 32>}, {pipeline_mode = #tpu.pipeline_mode<synchronous>, transform_indices = @transform_3, window_bounds = array<i64: 1, 32>}, {pipeline_mode = #tpu.pipeline_mode<synchronous>, transform_indices = @transform_4, window_bounds = array<i64: 32, 2>}, {pipeline_mode = #tpu.pipeline_mode<synchronous>, transform_indices = @transform_5, window_bounds = array<i64: 1, 2>}, {transform_indices = @transform_6, window_bounds = array<i64: 8, 2>}]} {
    %c0 = arith.constant 0 : index
    %c0_0 = arith.constant 0 : index
    %0 = vector.load %arg1[%c0, %c0_0] : memref<8x32xf32, #tpu.memory_space<vmem>>, vector<8x32xf32>
    %c0_1 = arith.constant 0 : index
    %c0_2 = arith.constant 0 : index
    %c0_3 = arith.constant 0 : index
    %1 = vector.load %arg2[%c0_1, %c0_2, %c0_3] : memref<8x8x32xf32, #tpu.memory_space<vmem>>, vector<8x8x32xf32>
    %c0_4 = arith.constant 0 : index
    %c0_5 = arith.constant 0 : index
    %2 = vector.load %arg3[%c0_4, %c0_5] : memref<32x32xf32, #tpu.memory_space<vmem>>, vector<32x32xf32>
    %cst = arith.constant dense<0.000000e+00> : vector<8x32xf32>
    %3 = tpu.matmul %0, %2, %cst {dimension_numbers = #tpu.dot_dimension_numbers<[1], [0], [0], [1], [0, 0, 1, 1], [], []>} : vector<8x32xf32>, vector<32x32xf32>, vector<8x32xf32> -> vector<8x32xf32>
    %c0_6 = arith.constant 0 : index
    %c0_7 = arith.constant 0 : index
    %4 = vector.load %arg4[%c0_6, %c0_7] : memref<1x32xf32, #tpu.memory_space<vmem>>, vector<1x32xf32>
    %5 = vector.broadcast %4 : vector<1x32xf32> to vector<8x32xf32>
    %6 = arith.addf %3, %5 : vector<8x32xf32>
    %7 = vector.shape_cast %6 : vector<8x32xf32> to vector<8x1x32xf32>
    %8 = vector.broadcast %7 : vector<8x1x32xf32> to vector<8x8x32xf32>
    %9 = arith.mulf %8, %1 : vector<8x8x32xf32>
    %cst_8 = arith.constant dense<0.000000e+00> : vector<8x8xf32>
    %10 = vector.multi_reduction <add>, %9, %cst_8 [2] : vector<8x8x32xf32> to vector<8x8xf32>
    %cst_9 = arith.constant dense<0xFF800000> : vector<8xf32>
    %11 = vector.multi_reduction <maximumf>, %10, %cst_9 [1] : vector<8x8xf32> to vector<8xf32>
    %12 = vector.shape_cast %11 : vector<8xf32> to vector<8x1xf32>
    %13 = vector.broadcast %12 : vector<8x1xf32> to vector<8x8xf32>
    %14 = arith.subf %10, %13 : vector<8x8xf32>
    %15 = math.exp %14 : vector<8x8xf32>
    %cst_10 = arith.constant dense<0.000000e+00> : vector<8xf32>
    %16 = vector.multi_reduction <add>, %15, %cst_10 [1] : vector<8x8xf32> to vector<8xf32>
    %17 = vector.shape_cast %16 : vector<8xf32> to vector<8x1xf32>
    %18 = tpu.reciprocal %17 : vector<8x1xf32> -> vector<8x1xf32>
    %19 = vector.broadcast %18 : vector<8x1xf32> to vector<8x8xf32>
    %20 = arith.mulf %15, %19 : vector<8x8xf32>
    %21 = vector.shape_cast %20 : vector<8x8xf32> to vector<8x8x1xf32>
    %22 = vector.broadcast %21 : vector<8x8x1xf32> to vector<8x8x32xf32>
    %23 = arith.mulf %22, %1 : vector<8x8x32xf32>
    %cst_11 = arith.constant dense<0.000000e+00> : vector<8x32xf32>
    %24 = vector.multi_reduction <add>, %23, %cst_11 [1] : vector<8x8x32xf32> to vector<8x32xf32>
    %c0_12 = arith.constant 0 : index
    %c0_13 = arith.constant 0 : index
    %25 = vector.load %arg5[%c0_12, %c0_13] : memref<32x2xf32, #tpu.memory_space<vmem>>, vector<32x2xf32>
    %cst_14 = arith.constant dense<0.000000e+00> : vector<8x2xf32>
    %26 = tpu.matmul %24, %25, %cst_14 {dimension_numbers = #tpu.dot_dimension_numbers<[1], [0], [0], [1], [0, 0, 1, 1], [], []>} : vector<8x32xf32>, vector<32x2xf32>, vector<8x2xf32> -> vector<8x2xf32>
    %c0_15 = arith.constant 0 : index
    %c0_16 = arith.constant 0 : index
    %27 = vector.load %arg6[%c0_15, %c0_16] : memref<1x2xf32, #tpu.memory_space<vmem>>, vector<1x2xf32>
    %28 = vector.broadcast %27 : vector<1x2xf32> to vector<8x2xf32>
    %29 = arith.addf %26, %28 : vector<8x2xf32>
    %cst_17 = arith.constant dense<0xFF800000> : vector<8xf32>
    %30 = vector.multi_reduction <maximumf>, %29, %cst_17 [1] : vector<8x2xf32> to vector<8xf32>
    %31 = vector.shape_cast %30 : vector<8xf32> to vector<8x1xf32>
    %32 = vector.broadcast %31 : vector<8x1xf32> to vector<8x2xf32>
    %33 = arith.subf %29, %32 : vector<8x2xf32>
    %34 = math.exp %33 : vector<8x2xf32>
    %cst_18 = arith.constant dense<0.000000e+00> : vector<8xf32>
    %35 = vector.multi_reduction <add>, %34, %cst_18 [1] : vector<8x2xf32> to vector<8xf32>
    %36 = vector.shape_cast %35 : vector<8xf32> to vector<8x1xf32>
    %37 = math.log %36 : vector<8x1xf32>
    %38 = vector.broadcast %37 : vector<8x1xf32> to vector<8x2xf32>
    %39 = arith.subf %33, %38 : vector<8x2xf32>
    %c0_19 = arith.constant 0 : index
    %c0_20 = arith.constant 0 : index
    %40 = vector.load %arg7[%c0_19, %c0_20] : memref<8x2xf32, #tpu.memory_space<vmem>>, vector<8x2xf32>
    tpu.vector_store %arg7[%c0_19, %c0_20], %39 {strides = array<i32>} : memref<8x2xf32, #tpu.memory_space<vmem>>, vector<8x2xf32>,
    return
  }
  func.func @transform_0(%arg0: i32) -> (i32, i32) {
    %c0_i32 = arith.constant 0 : i32
    %c0_i32_0 = arith.constant 0 : i32
    return %arg0, %c0_i32 : i32, i32
  }
  func.func @transform_1(%arg0: i32) -> (i32, i32, i32) {
    %c0_i32 = arith.constant 0 : i32
    %c0_i32_0 = arith.constant 0 : i32
    %c0_i32_1 = arith.constant 0 : i32
    return %arg0, %c0_i32, %c0_i32_0 : i32, i32, i32
  }
  func.func @transform_2(%arg0: i32) -> (i32, i32) {
    %c0_i32 = arith.constant 0 : i32
    %c0_i32_0 = arith.constant 0 : i32
    %c0_i32_1 = arith.constant 0 : i32
    return %c0_i32, %c0_i32_0 : i32, i32
  }
  func.func @transform_3(%arg0: i32) -> (i32, i32) {
    %c0_i32 = arith.constant 0 : i32
    %c0_i32_0 = arith.constant 0 : i32
    %c0_i32_1 = arith.constant 0 : i32
    return %c0_i32, %c0_i32_0 : i32, i32
  }
  func.func @transform_4(%arg0: i32) -> (i32, i32) {
    %c0_i32 = arith.constant 0 : i32
    %c0_i32_0 = arith.constant 0 : i32
    %c0_i32_1 = arith.constant 0 : i32
    return %c0_i32, %c0_i32_0 : i32, i32
  }
  func.func @transform_5(%arg0: i32) -> (i32, i32) {
    %c0_i32 = arith.constant 0 : i32
    %c0_i32_0 = arith.constant 0 : i32
    %c0_i32_1 = arith.constant 0 : i32
    return %c0_i32, %c0_i32_0 : i32, i32
  }
  func.func @transform_6(%arg0: i32) -> (i32, i32) {
    %c0_i32 = arith.constant 0 : i32
    %c0_i32_0 = arith.constant 0 : i32
    return %arg0, %c0_i32 : i32, i32
  }
}

</mosaic_0001>

<llo_original>
// kernel: tpu_custom_call.1
$region0: #{tpu_custom_call.1}
  #allocation0 [shape = 'u32[]', space=smem, size = 0x4, offset = 0x4, fixed_abs, tag = 'smem constant byte address 0x4 - core index']
  #allocation1 [shape = 'u32[144,128]{1,0:T(1,128)}', space=vmem, size = 0x12000, scoped, tag = 'internal scratch']
  %s0 = inlined_call_operand.vmem [shape: f32[8,32], index: 0, kind: input, shape index: {}]
  %s1 = inlined_call_operand.hbm [shape: f32[8,8,32], index: 1, kind: input, shape index: {}]
  %s2 = inlined_call_operand.vmem [shape: f32[32,32], index: 2, kind: input, shape index: {}]
  %s3 = inlined_call_operand.vmem [shape: f32[1,32], index: 3, kind: input, shape index: {}]
  %s4 = inlined_call_operand.vmem [shape: f32[32,2], index: 4, kind: input, shape index: {}]
  %s5 = inlined_call_operand.vmem [shape: f32[1,2], index: 5, kind: input, shape index: {}]
  %s6 = inlined_call_operand.vmem [shape: f32[8,2], index: 6, kind: output, shape index: {}]
  %s7 = sld [smem:[#allocation0]]
  $region38: #{tpu_custom_call.1} parent=0
    _
  %s9 = ssub.s32 1, %s7
  %s10 = scalar_select 0, %s9, %s7
  $region1: #{tpu_custom_call.1} parent=0
    #allocation2 [shape = 'u8[32768]{0}', space=vmem, size = 0x8000, scoped, tag = 'input window, operand 1, single buffered']
    #allocation3 [shape = 's32[1]{0}', space=sflag, size = 0x4, scoped, tag = 'scoped memory for tpu_custom_call.1']
    %11 = vsyncpa [#allocation3], 0
    // Predicated region
    $region2: #{tpu_custom_call.1} parent=1 // pred_check
      _
    $region3: #{tpu_custom_call.1} parent=1 // pred_check_branch
      %13 = sbr.rel (0) target = $region5
    $region4: #{tpu_custom_call.1} parent=1 // pred_region
      _
    $region5: #{tpu_custom_call.1} parent=1 // pred_fallthru
      _
    // Predicated region
    $region6: #{tpu_custom_call.1} parent=1 // pred_check
      _
    $region7: #{tpu_custom_call.1} parent=1 // pred_check_branch
      %15 = sbr.rel (0) target = $region9
    $region8: #{tpu_custom_call.1} parent=1 // pred_region
      %s17 = ssub.s32 1024, 1024
      %18 = vsyncadd [#allocation3], %s17
      %s19 = sshll.u32 [#allocation2], 4
      %s20 = int_to_ptr.vmem [resolvable:$true] %s19
      %25 = dma.hbm_to_vmem [thread:$0]  %s1, 1024, %s20, [#allocation3], 128, 128, 8
    $region9: #{tpu_custom_call.1} parent=1 // pred_fallthru
      _
    // Predicated region
    $region10: #{tpu_custom_call.1} parent=1 // pred_check
      _
    $region11: #{tpu_custom_call.1} parent=1 // pred_check_branch
      %27 = sbr.rel (0) target = $region13
    $region12: #{tpu_custom_call.1} parent=1 // pred_region
      _
    $region13: #{tpu_custom_call.1} parent=1 // pred_fallthru
      _
    // Predicated region
    $region14: #{tpu_custom_call.1} parent=1 // pred_check
      _
    $region15: #{tpu_custom_call.1} parent=1 // pred_check_branch
      %29 = sbr.rel (0) target = $region17
    $region16: #{tpu_custom_call.1} parent=1 // pred_region
      _
    $region17: #{tpu_custom_call.1} parent=1 // pred_fallthru
      _
    // Predicated region
    $region18: #{tpu_custom_call.1} parent=1 // pred_check
      _
    $region19: #{tpu_custom_call.1} parent=1 // pred_check_branch
      %31 = sbr.rel (0) target = $region21
    $region20: #{tpu_custom_call.1} parent=1 // pred_region
      _
    $region21: #{tpu_custom_call.1} parent=1 // pred_fallthru
      _
    // Predicated region
    $region22: #{tpu_custom_call.1} parent=1 // pred_check
      _
    $region23: #{tpu_custom_call.1} parent=1 // pred_check_branch
      %33 = sbr.rel (0) target = $region25
    $region24: #{tpu_custom_call.1} parent=1 // pred_region
      _
    $region25: #{tpu_custom_call.1} parent=1 // pred_fallthru
      _
    // Predicated region
    $region26: #{tpu_custom_call.1} parent=1 // pred_check
      _
    $region27: #{tpu_custom_call.1} parent=1 // pred_check_branch
      %35 = sbr.rel (0) target = $region29
    $region28: #{tpu_custom_call.1} parent=1 // pred_region
      %36 = dma.done [#allocation3], 1024
    $region29: #{tpu_custom_call.1} parent=1 // pred_fallthru
      _
    %v37 = vld [vmem:[%s0] sm:$0xff]
    %v38 = vld [vmem:[#allocation2] sm:$0xff]
    %v39 = vld [vmem:[#allocation2 + $0x8] sm:$0xff]
    %v40 = vld [vmem:[#allocation2 + $0x10] sm:$0xff]
    %v41 = vld [vmem:[#allocation2 + $0x18] sm:$0xff]
    %v42 = vld [vmem:[#allocation2 + $0x20] sm:$0xff]
    %v43 = vld [vmem:[#allocation2 + $0x28] sm:$0xff]
    %v44 = vld [vmem:[#allocation2 + $0x30] sm:$0xff]
    %v45 = vld [vmem:[#allocation2 + $0x38] sm:$0xff]
    %v46 = vld [vmem:[%s2] sm:$0xff]
    %v47 = vld [vmem:[%s2 + $0x8] sm:$0xff]
    %v48 = vld [vmem:[%s2 + $0x10] sm:$0xff]
    %v49 = vld [vmem:[%s2 + $0x18] sm:$0xff]
    %v50 = vld [vmem:[%s3] sm:$0x1]
    %v52 = vlaneseq
    %v53 = vshrl.u32 %v52, 7
    %v54 = vsub.s32 0, %v53
    %v55 = vrot.slane %v50, %v54
    %vm57 = vcmask 261120
    %v59 = vsel %vm57, %v37, 0
    %61 = vmatprep.subr.mxu0 0.0
    %62 = vmatpush1.msra.mxu0 %v46
    %63 = vmatprep.subr.mxu0 0.0
    %64 = vmatpush1.msra.mxu0 %v47
    %65 = vmatprep.subr.mxu0 0.0
    %66 = vmatpush1.msra.mxu0 %v48
    %67 = vmatprep.subr.mxu0 0.0
    %68 = vmatpush1.msra.mxu0 %v49
    %69 = vmatprep.subr.mxu0 0.0
    %70 = vmatpush1.msra.mxu0 0.0
    %71 = vmatprep.subr.mxu0 0.0
    %72 = vmatpush1.msra.mxu0 0.0
    %73 = vmatprep.subr.mxu0 0.0
    %74 = vmatpush1.msra.mxu0 0.0
    %75 = vmatprep.subr.mxu0 0.0
    %76 = vmatpush1.msra.mxu0 0.0
    %77 = vmatprep.subr.mxu0 0.0
    %78 = vmatpush1.msra.mxu0 0.0
    %79 = vmatprep.subr.mxu0 0.0
    %80 = vmatpush1.msra.mxu0 0.0
    %81 = vmatprep.subr.mxu0 0.0
    %82 = vmatpush1.msra.mxu0 0.0
    %83 = vmatprep.subr.mxu0 0.0
    %84 = vmatpush1.msra.mxu0 0.0
    %85 = vmatprep.subr.mxu0 0.0
    %86 = vmatpush1.msra.mxu0 0.0
    %87 = vmatprep.subr.mxu0 0.0
    %88 = vmatpush1.msra.mxu0 0.0
    %89 = vmatprep.subr.mxu0 0.0
    %90 = vmatpush1.msra.mxu0 0.0
    %91 = vmatprep.subr.mxu0 0.0
    %92 = vmatpush1.msra.mxu0 0.0
    %93 = vmatprep.subr.mxu0 0.0
    %94 = vmatpush1.msra.mxu0 0.0
    %95 = vmatprep.subr.mxu0 0.0
    %96 = vmatpush1.msra.mxu0 0.0
    %97 = vmatprep.subr.mxu0 0.0
    %98 = vmatpush1.msra.mxu0 0.0
    %99 = vmatprep.subr.mxu0 0.0
    %100 = vmatpush1.msra.mxu0 0.0
    %101 = vmatprep.subr.mxu0 0.0
    %102 = vmatpush1.msra.mxu0 0.0
    %103 = vmatprep.subr.mxu0 0.0
    %104 = vmatpush1.msra.mxu0 0.0
    %105 = vmatprep.subr.mxu0 0.0
    %106 = vmatpush1.msra.mxu0 0.0
    %107 = vmatprep.subr.mxu0 0.0
    %108 = vmatpush1.msra.mxu0 0.0
    %109 = vmatprep.subr.mxu0 0.0
    %110 = vmatpush1.msra.mxu0 0.0
    %111 = vmatprep.subr.mxu0 0.0
    %112 = vmatpush1.msra.mxu0 0.0
    %113 = vmatprep.subr.mxu0 0.0
    %114 = vmatpush1.msra.mxu0 0.0
    %115 = vmatprep.subr.mxu0 0.0
    %116 = vmatpush1.msra.mxu0 0.0
    %117 = vmatprep.subr.mxu0 0.0
    %118 = vmatpush1.msra.mxu0 0.0
    %119 = vmatprep.subr.mxu0 0.0
    %120 = vmatpush1.msra.mxu0 0.0
    %121 = vmatprep.subr.mxu0 0.0
    %122 = vmatpush1.msra.mxu0 0.0
    %123 = vmatprep.subr.mxu0 0.0
    %124 = vmatpush1.msra.mxu0 0.0
    %125 = vmatprep.mubr.f32.mxu0 0.0
    %126 = vmatmul.mubr.f32.gmra.mrb[0].mxu0 %v59
    %v127 = vpop.f32.mrb[0].mxu0
    %v128 = vadd.f32 %v55, %v127
    %v129 = vpop.f32.mrb[0].mxu0
    %130 = vdwg.mxu0
    %v132 = vcombine.high %v128, %v128
    %v134 = vunpack.c.l.s4 1966171168
    %v135 = vunpack.c.0.s8 %v134
    %v136 = vlaneseq
    %v137 = vshrl.u32 %v136, 7
    %v138 = vsub.s32 %v135, %v137
    %v139 = vrot.slane %v128, %v138
    %v141 = vunpack.c.l.s4 1966171168
    %v142 = vunpack.c.0.s8 %v141
    %v143 = vlaneseq
    %v144 = vshrl.u32 %v143, 7
    %v145 = vsub.s32 %v142, %v144
    %v146 = vrot.slane %v132, %v145
    %v147 = vcombine.high %v139, %v139
    %v148 = vcombine.high %v146, %v146
    %v150 = vunpack.c.l.s4 1966171168
    %v151 = vunpack.c.0.s8 %v150
    %v152 = vlaneseq
    %v153 = vshrl.u32 %v152, 7
    %v154 = vsub.s32 %v151, %v153
    %v155 = vrot.slane %v139, %v154
    %v157 = vunpack.c.l.s4 1966171168
    %v158 = vunpack.c.0.s8 %v157
    %v159 = vlaneseq
    %v160 = vshrl.u32 %v159, 7
    %v161 = vsub.s32 %v158, %v160
    %v162 = vrot.slane %v146, %v161
    %v164 = vunpack.c.l.s4 1966171168
    %v165 = vunpack.c.0.s8 %v164
    %v166 = vlaneseq
    %v167 = vshrl.u32 %v166, 7
    %v168 = vsub.s32 %v165, %v167
    %v169 = vrot.slane %v147, %v168
    %v171 = vunpack.c.l.s4 1966171168
    %v172 = vunpack.c.0.s8 %v171
    %v173 = vlaneseq
    %v174 = vshrl.u32 %v173, 7
    %v175 = vsub.s32 %v172, %v174
    %v176 = vrot.slane %v148, %v175
    %v177 = vcombine.high %v155, %v155
    %v178 = vcombine.high %v162, %v162
    %v179 = vcombine.high %v169, %v169
    %v180 = vcombine.high %v176, %v176
    %v181 = vlaneseq
    %v182 = vshrl.u32 %v181, 7
    %v183 = vsub.s32 0, %v182
    %v184 = vrot.slane %v155, %v183
    %v185 = vlaneseq
    %v186 = vshrl.u32 %v185, 7
    %v187 = vsub.s32 0, %v186
    %v188 = vrot.slane %v169, %v187
    %v189 = vlaneseq
    %v190 = vshrl.u32 %v189, 7
    %v191 = vsub.s32 0, %v190
    %v192 = vrot.slane %v177, %v191
    %v193 = vlaneseq
    %v194 = vshrl.u32 %v193, 7
    %v195 = vsub.s32 0, %v194
    %v196 = vrot.slane %v179, %v195
    %v197 = vlaneseq
    %v198 = vshrl.u32 %v197, 7
    %v199 = vsub.s32 0, %v198
    %v200 = vrot.slane %v162, %v199
    %v201 = vlaneseq
    %v202 = vshrl.u32 %v201, 7
    %v203 = vsub.s32 0, %v202
    %v204 = vrot.slane %v176, %v203
    %v205 = vlaneseq
    %v206 = vshrl.u32 %v205, 7
    %v207 = vsub.s32 0, %v206
    %v208 = vrot.slane %v178, %v207
    %v209 = vlaneseq
    %v210 = vshrl.u32 %v209, 7
    %v211 = vsub.s32 0, %v210
    %v212 = vrot.slane %v180, %v211
    %v221 = vmul.f32 %v184, %v38
    %v222 = vmul.f32 %v188, %v39
    %v223 = vmul.f32 %v192, %v40
    %v224 = vmul.f32 %v196, %v41
    %v225 = vmul.f32 %v200, %v42
    %v226 = vmul.f32 %v204, %v43
    %v227 = vmul.f32 %v208, %v44
    %v228 = vmul.f32 %v212, %v45
    %v229 = vsel %vm57, %v221, 0.0
    %230 = vadd.xlane.f32.xlu0 %v229
    %v231 = vpop.xlane.xlu0 %230
    %v232 = vsel %vm57, %v222, 0.0
    %233 = vadd.xlane.f32.xlu0 %v232
    %v234 = vpop.xlane.xlu0 %233
    %v235 = vsel %vm57, %v223, 0.0
    %236 = vadd.xlane.f32.xlu0 %v235
    %v237 = vpop.xlane.xlu0 %236
    %v238 = vsel %vm57, %v224, 0.0
    %239 = vadd.xlane.f32.xlu0 %v238
    %v240 = vpop.xlane.xlu0 %239
    %v241 = vsel %vm57, %v225, 0.0
    %242 = vadd.xlane.f32.xlu0 %v241
    %v243 = vpop.xlane.xlu0 %242
    %v244 = vsel %vm57, %v226, 0.0
    %245 = vadd.xlane.f32.xlu0 %v244
    %v246 = vpop.xlane.xlu0 %245
    %v247 = vsel %vm57, %v227, 0.0
    %248 = vadd.xlane.f32.xlu0 %v247
    %v249 = vpop.xlane.xlu0 %248
    %v250 = vsel %vm57, %v228, 0.0
    %251 = vadd.xlane.f32.xlu0 %v250
    %v252 = vpop.xlane.xlu0 %251
    %v261 = vlaneseq
    %v262 = vand.u32 %v261, 127
    %v263 = vlaneseq
    %v264 = vshrl.u32 %v263, 7
    %v265 = vsub.s32 %v262, %v264
    %v266 = vrot.slane %v231, %v265
    %v267 = vlaneseq
    %v268 = vshrl.u32 %v267, 7
    %v269 = vsub.s32 %v262, %v268
    %v270 = vrot.slane %v234, %v269
    %v271 = vlaneseq
    %v272 = vshrl.u32 %v271, 7
    %v273 = vsub.s32 %v262, %v272
    %v274 = vrot.slane %v237, %v273
    %v275 = vlaneseq
    %v276 = vshrl.u32 %v275, 7
    %v277 = vsub.s32 %v262, %v276
    %v278 = vrot.slane %v240, %v277
    %v279 = vlaneseq
    %v280 = vshrl.u32 %v279, 7
    %v281 = vsub.s32 %v262, %v280
    %v282 = vrot.slane %v243, %v281
    %v283 = vlaneseq
    %v284 = vshrl.u32 %v283, 7
    %v285 = vsub.s32 %v262, %v284
    %v286 = vrot.slane %v246, %v285
    %v287 = vlaneseq
    %v288 = vshrl.u32 %v287, 7
    %v289 = vsub.s32 %v262, %v288
    %v290 = vrot.slane %v249, %v289
    %v291 = vlaneseq
    %v292 = vshrl.u32 %v291, 7
    %v293 = vsub.s32 %v262, %v292
    %v294 = vrot.slane %v252, %v293
    %vm295 = vcmask 1041409
    %v296 = vsel %vm295, %v270, %v266
    %vm297 = vcmask 1042434
    %v298 = vsel %vm297, %v274, %v296
    %vm299 = vcmask 1043459
    %v300 = vsel %vm299, %v278, %v298
    %vm301 = vcmask 1044484
    %v302 = vsel %vm301, %v282, %v300
    %vm303 = vcmask 1045509
    %v304 = vsel %vm303, %v286, %v302
    %vm305 = vcmask 1046534
    %v306 = vsel %vm305, %v290, %v304
    %vm307 = vcmask 1047559
    %v308 = vsel %vm307, %v294, %v306
    %vm310 = vcmask 64512
    %v311 = vsel %vm310, %v308, -inf
    %312 = vmax.xlane.f32.xlu0 %v311
    %v313 = vpop.xlane.xlu0 %312
    %v315 = vlaneseq
    %v316 = vshrl.u32 %v315, 7
    %v317 = vsub.s32 0, %v316
    %v318 = vrot.slane %v313, %v317
    %v319 = vlaneseq
    %v320 = vshrl.u32 %v319, 7
    %v321 = vsub.s32 1, %v320
    %v322 = vrot.slane %v313, %v321
    %v323 = vlaneseq
    %v324 = vshrl.u32 %v323, 7
    %v325 = vsub.s32 2, %v324
    %v326 = vrot.slane %v313, %v325
    %v327 = vlaneseq
    %v328 = vshrl.u32 %v327, 7
    %v329 = vsub.s32 3, %v328
    %v330 = vrot.slane %v313, %v329
    %v331 = vlaneseq
    %v332 = vshrl.u32 %v331, 7
    %v333 = vsub.s32 4, %v332
    %v334 = vrot.slane %v313, %v333
    %v335 = vlaneseq
    %v336 = vshrl.u32 %v335, 7
    %v337 = vsub.s32 5, %v336
    %v338 = vrot.slane %v313, %v337
    %v339 = vlaneseq
    %v340 = vshrl.u32 %v339, 7
    %v341 = vsub.s32 6, %v340
    %v342 = vrot.slane %v313, %v341
    %v343 = vlaneseq
    %v344 = vshrl.u32 %v343, 7
    %v345 = vsub.s32 7, %v344
    %v346 = vrot.slane %v313, %v345
    %v355 = vsub.f32 %v231, %v318
    %v356 = vsub.f32 %v234, %v322
    %v357 = vsub.f32 %v237, %v326
    %v358 = vsub.f32 %v240, %v330
    %v359 = vsub.f32 %v243, %v334
    %v360 = vsub.f32 %v246, %v338
    %v361 = vsub.f32 %v249, %v342
    %v362 = vsub.f32 %v252, %v346
    %v363 = vmul.f32 %v355, 1.442695
    %v364 = vpow.pop %v363
    %v365 = vmul.f32 %v356, 1.442695
    %v366 = vpow.pop %v365
    %v367 = vmul.f32 %v357, 1.442695
    %v368 = vpow.pop %v367
    %v369 = vmul.f32 %v358, 1.442695
    %v370 = vpow.pop %v369
    %v371 = vmul.f32 %v359, 1.442695
    %v372 = vpow.pop %v371
    %v373 = vmul.f32 %v360, 1.442695
    %v374 = vpow.pop %v373
    %v375 = vmul.f32 %v361, 1.442695
    %v376 = vpow.pop %v375
    %v377 = vmul.f32 %v362, 1.442695
    %v378 = vpow.pop %v377
    %387 = vset.pattern.permute.xlu0 0
    %388 = vperm.xlu0 %387, %v364
    %v389 = vpop.permute.xlu0 %388
    %390 = vset.pattern.permute.xlu0 0
    %391 = vperm.xlu0 %390, %v366
    %v392 = vpop.permute.xlu0 %391
    %393 = vset.pattern.permute.xlu0 0
    %394 = vperm.xlu0 %393, %v368
    %v395 = vpop.permute.xlu0 %394
    %396 = vset.pattern.permute.xlu0 0
    %397 = vperm.xlu0 %396, %v370
    %v398 = vpop.permute.xlu0 %397
    %399 = vset.pattern.permute.xlu0 0
    %400 = vperm.xlu0 %399, %v372
    %v401 = vpop.permute.xlu0 %400
    %402 = vset.pattern.permute.xlu0 0
    %403 = vperm.xlu0 %402, %v374
    %v404 = vpop.permute.xlu0 %403
    %405 = vset.pattern.permute.xlu0 0
    %406 = vperm.xlu0 %405, %v376
    %v407 = vpop.permute.xlu0 %406
    %408 = vset.pattern.permute.xlu0 0
    %409 = vperm.xlu0 %408, %v378
    %v410 = vpop.permute.xlu0 %409
    %v411 = vlaneseq
    %v412 = vshrl.u32 %v411, 7
    %v413 = vsub.s32 %v262, %v412
    %v414 = vrot.slane %v389, %v413
    %v415 = vlaneseq
    %v416 = vshrl.u32 %v415, 7
    %v417 = vsub.s32 %v262, %v416
    %v418 = vrot.slane %v392, %v417
    %v419 = vlaneseq
    %v420 = vshrl.u32 %v419, 7
    %v421 = vsub.s32 %v262, %v420
    %v422 = vrot.slane %v395, %v421
    %v423 = vlaneseq
    %v424 = vshrl.u32 %v423, 7
    %v425 = vsub.s32 %v262, %v424
    %v426 = vrot.slane %v398, %v425
    %v427 = vlaneseq
    %v428 = vshrl.u32 %v427, 7
    %v429 = vsub.s32 %v262, %v428
    %v430 = vrot.slane %v401, %v429
    %v431 = vlaneseq
    %v432 = vshrl.u32 %v431, 7
    %v433 = vsub.s32 %v262, %v432
    %v434 = vrot.slane %v404, %v433
    %v435 = vlaneseq
    %v436 = vshrl.u32 %v435, 7
    %v437 = vsub.s32 %v262, %v436
    %v438 = vrot.slane %v407, %v437
    %v439 = vlaneseq
    %v440 = vshrl.u32 %v439, 7
    %v441 = vsub.s32 %v262, %v440
    %v442 = vrot.slane %v410, %v441
    %v443 = vsel %vm295, %v418, %v414
    %v444 = vsel %vm297, %v422, %v443
    %v445 = vsel %vm299, %v426, %v444
    %v446 = vsel %vm301, %v430, %v445
    %v447 = vsel %vm303, %v434, %v446
    %v448 = vsel %vm305, %v438, %v447
    %v449 = vsel %vm307, %v442, %v448
    %v451 = vsel %vm310, %v449, 0.0
    %452 = vadd.xlane.f32.xlu0 %v451
    %v453 = vpop.xlane.xlu0 %452
    %v454 = vrcp.pop %v453
    %v456 = vlaneseq
    %v457 = vshrl.u32 %v456, 7
    %v458 = vsub.s32 0, %v457
    %v459 = vrot.slane %v454, %v458
    %v460 = vlaneseq
    %v461 = vshrl.u32 %v460, 7
    %v462 = vsub.s32 1, %v461
    %v463 = vrot.slane %v454, %v462
    %v464 = vlaneseq
    %v465 = vshrl.u32 %v464, 7
    %v466 = vsub.s32 2, %v465
    %v467 = vrot.slane %v454, %v466
    %v468 = vlaneseq
    %v469 = vshrl.u32 %v468, 7
    %v470 = vsub.s32 3, %v469
    %v471 = vrot.slane %v454, %v470
    %v472 = vlaneseq
    %v473 = vshrl.u32 %v472, 7
    %v474 = vsub.s32 4, %v473
    %v475 = vrot.slane %v454, %v474
    %v476 = vlaneseq
    %v477 = vshrl.u32 %v476, 7
    %v478 = vsub.s32 5, %v477
    %v479 = vrot.slane %v454, %v478
    %v480 = vlaneseq
    %v481 = vshrl.u32 %v480, 7
    %v482 = vsub.s32 6, %v481
    %v483 = vrot.slane %v454, %v482
    %v484 = vlaneseq
    %v485 = vshrl.u32 %v484, 7
    %v486 = vsub.s32 7, %v485
    %v487 = vrot.slane %v454, %v486
    %v496 = vmul.f32 %v364, %v459
    %v497 = vmul.f32 %v366, %v463
    %v498 = vmul.f32 %v368, %v467
    %v499 = vmul.f32 %v370, %v471
    %v500 = vmul.f32 %v372, %v475
    %v501 = vmul.f32 %v374, %v479
    %v502 = vmul.f32 %v376, %v483
    %v503 = vmul.f32 %v378, %v487
    %505 = vset.pattern.permute.xlu0 0
    %506 = vperm.xlu0 %505, %v496
    %v507 = vpop.permute.xlu0 %506
    %510 = vset.pattern.permute.xlu0 0
    %511 = vperm.xlu0 %510, %v497
    %v512 = vpop.permute.xlu0 %511
    %515 = vset.pattern.permute.xlu0 0
    %516 = vperm.xlu0 %515, %v498
    %v517 = vpop.permute.xlu0 %516
    %520 = vset.pattern.permute.xlu0 0
    %521 = vperm.xlu0 %520, %v499
    %v522 = vpop.permute.xlu0 %521
    %525 = vset.pattern.permute.xlu0 0
    %526 = vperm.xlu0 %525, %v500
    %v527 = vpop.permute.xlu0 %526
    %530 = vset.pattern.permute.xlu0 0
    %531 = vperm.xlu0 %530, %v501
    %v532 = vpop.permute.xlu0 %531
    %535 = vset.pattern.permute.xlu0 0
    %536 = vperm.xlu0 %535, %v502
    %v537 = vpop.permute.xlu0 %536
    %540 = vset.pattern.permute.xlu0 0
    %541 = vperm.xlu0 %540, %v503
    %v542 = vpop.permute.xlu0 %541
    %v544 = vmul.f32 %v507, %v38
    %v545 = vmul.f32 %v512, %v39
    %v546 = vmul.f32 %v517, %v40
    %v547 = vmul.f32 %v522, %v41
    %v548 = vmul.f32 %v527, %v42
    %v549 = vmul.f32 %v532, %v43
    %v550 = vmul.f32 %v537, %v44
    %v551 = vmul.f32 %v542, %v45
    %v552 = vsel %vm57, %v544, 0.0
    %v553 = vrot.slane %v552, 4
    %v554 = vadd.f32 %v552, %v553
    %v555 = vrot.slane %v554, 2
    %v556 = vadd.f32 %v554, %v555
    %v557 = vrot.slane %v556, 1
    %v558 = vadd.f32 %v556, %v557
    %v559 = vsel %vm57, %v545, 0.0
    %v560 = vrot.slane %v559, 4
    %v561 = vadd.f32 %v559, %v560
    %v562 = vrot.slane %v561, 2
    %v563 = vadd.f32 %v561, %v562
    %v564 = vrot.slane %v563, 1
    %v565 = vadd.f32 %v563, %v564
    %v566 = vsel %vm57, %v546, 0.0
    %v567 = vrot.slane %v566, 4
    %v568 = vadd.f32 %v566, %v567
    %v569 = vrot.slane %v568, 2
    %v570 = vadd.f32 %v568, %v569
    %v571 = vrot.slane %v570, 1
    %v572 = vadd.f32 %v570, %v571
    %v573 = vsel %vm57, %v547, 0.0
    %v574 = vrot.slane %v573, 4
    %v575 = vadd.f32 %v573, %v574
    %v576 = vrot.slane %v575, 2
    %v577 = vadd.f32 %v575, %v576
    %v578 = vrot.slane %v577, 1
    %v579 = vadd.f32 %v577, %v578
    %v580 = vsel %vm57, %v548, 0.0
    %v581 = vrot.slane %v580, 4
    %v582 = vadd.f32 %v580, %v581
    %v583 = vrot.slane %v582, 2
    %v584 = vadd.f32 %v582, %v583
    %v585 = vrot.slane %v584, 1
    %v586 = vadd.f32 %v584, %v585
    %v587 = vsel %vm57, %v549, 0.0
    %v588 = vrot.slane %v587, 4
    %v589 = vadd.f32 %v587, %v588
    %v590 = vrot.slane %v589, 2
    %v591 = vadd.f32 %v589, %v590
    %v592 = vrot.slane %v591, 1
    %v593 = vadd.f32 %v591, %v592
    %v594 = vsel %vm57, %v550, 0.0
    %v595 = vrot.slane %v594, 4
    %v596 = vadd.f32 %v594, %v595
    %v597 = vrot.slane %v596, 2
    %v598 = vadd.f32 %v596, %v597
    %v599 = vrot.slane %v598, 1
    %v600 = vadd.f32 %v598, %v599
    %v601 = vsel %vm57, %v551, 0.0
    %v602 = vrot.slane %v601, 4
    %v603 = vadd.f32 %v601, %v602
    %v604 = vrot.slane %v603, 2
    %v605 = vadd.f32 %v603, %v604
    %v606 = vrot.slane %v605, 1
    %v607 = vadd.f32 %v605, %v606
    %v608 = vld [vmem:[%s4] sm:$0xff]
    %v609 = vld [vmem:[%s4 + $0x8] sm:$0xff]
    %v610 = vld [vmem:[%s4 + $0x10] sm:$0xff]
    %v611 = vld [vmem:[%s4 + $0x18] sm:$0xff]
    %v612 = vld [vmem:[%s5] sm:$0x1]
    %v614 = vlaneseq
    %v615 = vshrl.u32 %v614, 7
    %v616 = vsub.s32 0, %v615
    %v617 = vrot.slane %v612, %v616
    %v627 = vsel %vm295, %v565, %v558
    %v628 = vsel %vm297, %v572, %v627
    %v629 = vsel %vm299, %v579, %v628
    %v630 = vsel %vm301, %v586, %v629
    %v631 = vsel %vm303, %v593, %v630
    %v632 = vsel %vm305, %v600, %v631
    %v633 = vsel %vm307, %v607, %v632
    %v634 = vsel %vm57, %v633, 0
    %636 = vmatprep.subr.mxu0 0.0
    %637 = vmatpush1.msra.mxu0 %v608
    %638 = vmatprep.subr.mxu0 0.0
    %639 = vmatpush1.msra.mxu0 %v609
    %640 = vmatprep.subr.mxu0 0.0
    %641 = vmatpush1.msra.mxu0 %v610
    %642 = vmatprep.subr.mxu0 0.0
    %643 = vmatpush1.msra.mxu0 %v611
    %644 = vmatprep.subr.mxu0 0.0
    %645 = vmatpush1.msra.mxu0 0.0
    %646 = vmatprep.subr.mxu0 0.0
    %647 = vmatpush1.msra.mxu0 0.0
    %648 = vmatprep.subr.mxu0 0.0
    %649 = vmatpush1.msra.mxu0 0.0
    %650 = vmatprep.subr.mxu0 0.0
    %651 = vmatpush1.msra.mxu0 0.0
    %652 = vmatprep.subr.mxu0 0.0
    %653 = vmatpush1.msra.mxu0 0.0
    %654 = vmatprep.subr.mxu0 0.0
    %655 = vmatpush1.msra.mxu0 0.0
    %656 = vmatprep.subr.mxu0 0.0
    %657 = vmatpush1.msra.mxu0 0.0
    %658 = vmatprep.subr.mxu0 0.0
    %659 = vmatpush1.msra.mxu0 0.0
    %660 = vmatprep.subr.mxu0 0.0
    %661 = vmatpush1.msra.mxu0 0.0
    %662 = vmatprep.subr.mxu0 0.0
    %663 = vmatpush1.msra.mxu0 0.0
    %664 = vmatprep.subr.mxu0 0.0
    %665 = vmatpush1.msra.mxu0 0.0
    %666 = vmatprep.subr.mxu0 0.0
    %667 = vmatpush1.msra.mxu0 0.0
    %668 = vmatprep.subr.mxu0 0.0
    %669 = vmatpush1.msra.mxu0 0.0
    %670 = vmatprep.subr.mxu0 0.0
    %671 = vmatpush1.msra.mxu0 0.0
    %672 = vmatprep.subr.mxu0 0.0
    %673 = vmatpush1.msra.mxu0 0.0
    %674 = vmatprep.subr.mxu0 0.0
    %675 = vmatpush1.msra.mxu0 0.0
    %676 = vmatprep.subr.mxu0 0.0
    %677 = vmatpush1.msra.mxu0 0.0
    %678 = vmatprep.subr.mxu0 0.0
    %679 = vmatpush1.msra.mxu0 0.0
    %680 = vmatprep.subr.mxu0 0.0
    %681 = vmatpush1.msra.mxu0 0.0
    %682 = vmatprep.subr.mxu0 0.0
    %683 = vmatpush1.msra.mxu0 0.0
    %684 = vmatprep.subr.mxu0 0.0
    %685 = vmatpush1.msra.mxu0 0.0
    %686 = vmatprep.subr.mxu0 0.0
    %687 = vmatpush1.msra.mxu0 0.0
    %688 = vmatprep.subr.mxu0 0.0
    %689 = vmatpush1.msra.mxu0 0.0
    %690 = vmatprep.subr.mxu0 0.0
    %691 = vmatpush1.msra.mxu0 0.0
    %692 = vmatprep.subr.mxu0 0.0
    %693 = vmatpush1.msra.mxu0 0.0
    %694 = vmatprep.subr.mxu0 0.0
    %695 = vmatpush1.msra.mxu0 0.0
    %696 = vmatprep.subr.mxu0 0.0
    %697 = vmatpush1.msra.mxu0 0.0
    %698 = vmatprep.subr.mxu0 0.0
    %699 = vmatpush1.msra.mxu0 0.0
    %700 = vmatprep.mubr.f32.mxu0 0.0
    %701 = vmatmul.mubr.f32.gmra.mrb[0].mxu0 %v634
    %v702 = vpop.f32.mrb[0].mxu0
    %v703 = vadd.f32 %v617, %v702
    %v704 = vpop.f32.mrb[0].mxu0
    %705 = vdwg.mxu0
    %vm706 = vcmask 15360
    %v707 = vsel %vm706, %v703, -inf
    %708 = vmax.xlane.f32.xlu0 %v707
    %v709 = vpop.xlane.xlu0 %708
    %v710 = vsub.f32 %v703, %v709
    %v711 = vmul.f32 %v710, 1.442695
    %v712 = vpow.pop %v711
    %v713 = vsel %vm706, %v712, 0.0
    %714 = vadd.xlane.f32.xlu0 %v713
    %v715 = vpop.xlane.xlu0 %714
    %v716 = vlog2.pop %v715
    %v717 = vmul.f32 %v716, 0.6931472
    %v718 = vsub.f32 %v710, %v717
    %719 = vst.msk [vmem:[%s6] sm:$0xff] %vm706, %v718
    // Predicated region
    $region30: #{tpu_custom_call.1} parent=1 // pred_check
      _
    $region31: #{tpu_custom_call.1} parent=1 // pred_check_branch
      %721 = sbr.rel (0) target = $region33
    $region32: #{tpu_custom_call.1} parent=1 // pred_region
      _
    $region33: #{tpu_custom_call.1} parent=1 // pred_fallthru
      _
    // Predicated region
    $region34: #{tpu_custom_call.1} parent=1 // pred_check
      _
    $region35: #{tpu_custom_call.1} parent=1 // pred_check_branch
      %723 = sbr.rel (0) target = $region37
    $region36: #{tpu_custom_call.1} parent=1 // pred_region
      _
    $region37: #{tpu_custom_call.1} parent=1 // pred_fallthru
      _
    %724 = vsyncpa [#allocation3], 1

</llo_original>
